<compile_context>
chip_gen: v7x
topology: tpu7x:2x2x1
jax: 0.10.0
libtpu: 0.0.40
codegen_flags: <defaults>
</compile_context>

<pallas_src>
import functools

import jax
import jax.numpy as jnp
import numpy as np
from jax import lax
from jax.experimental import pallas as pl
from jax.experimental.pallas import tpu as pltpu

LANES = 128
ROW_ALIGN = 32        # tm granularity; also a safe packed-tile row multiple


def _round_up(x, m):
    return (x + m - 1) // m * m


def _num_tensorcores():
    """TensorCores per device: 2 on megacore chips (v4/v5p/v7x), else 1."""
    try:
        kind = jax.devices()[0].device_kind.lower()
    except Exception:
        return 1
    if "v4" in kind or "v5p" in kind or "v7" in kind or "7x" in kind:
        return 2
    return 1


def _sublane_multiple(*dtypes):
    """Row multiple of one packed (sublane) tile for the narrowest dtype."""
    min_bytes = min(max(1, min(4, jnp.dtype(d).itemsize)) for d in dtypes)
    return 8 * (4 // min_bytes)          # f32 -> 8, bf16 -> 16, int8 -> 32


def _sum_rows_to_8(x, tm):
    """Tree-reduce a (tm, 128) f32 value to (8, 128) using VPU adds only."""
    chunks = [x[k * 8:(k + 1) * 8, :] for k in range(tm // 8)]
    while len(chunks) > 1:
        nxt = [a + b for a, b in zip(chunks[0::2], chunks[1::2])]
        if len(chunks) % 2:
            nxt.append(chunks[-1])
        chunks = nxt
    return chunks[0]


def _focal_loss_kernel(w_ref, x_ref, t_ref, out_ref, acc_ref, *,
                       gamma, tm, blocks_per_core, total_blocks, rem_last,
                       uniform_weight, has_dup):
    """One grid step processes a (tm, 128) tile of logits/targets.

    w_ref   : SMEM (2,) alpha-prescaled class weights [w_neg, w_pos]
    x_ref   : VMEM (tm, 128) logits tile (native dtype)
    t_ref   : VMEM (tm, 128) targets tile (native dtype, exact 0/1)
    out_ref : SMEM (1, 1) per-shard partial sum
    acc_ref : VMEM (8, 128) f32 running accumulator (scratch)
    """
    c = pl.program_id(0)   # megacore shard index
    j = pl.program_id(1)   # streaming step inside this shard

    @pl.when(j == 0)
    def _():
        acc_ref[...] = jnp.zeros_like(acc_ref)

    x = x_ref[...].astype(jnp.float32)
    t = t_ref[...].astype(jnp.float32)

    # Numerically stable BCE-with-logits (matches F.binary_cross_entropy_with_logits):
    #   bce = max(x, 0) - x*t + log(1 + exp(-|x|))
    s = jnp.exp(-jnp.abs(x))
    bce = jnp.maximum(x, 0.0) - x * t + jnp.log1p(s)

    # 1 - pt computed directly:  1 - pt = (agree ? s : 1) / (1 + s)
    #   (agree == sign(x) matches the hard label; avoids a second exp and the
    #    cancellation of 1 - exp(-bce) at large |x|)
    den = 1.0 + s
    inv = pl.reciprocal(den, approx=True)
    inv = inv * (2.0 - den * inv)          # one Newton step on the VPU (~1 ulp)
    agree = (t > 0.5) == (x >= 0.0)
    one_minus_pt = jnp.where(agree, s, 1.0) * inv

    # (1 - pt) ** gamma — keep integer powers on the VPU (never exp+log).
    g = float(gamma)
    if g == 2.0:
        mod = one_minus_pt * one_minus_pt
    elif g == 1.0:
        mod = one_minus_pt
    elif g == 0.0:
        mod = jnp.ones_like(one_minus_pt)
    elif g.is_integer():
        mod = one_minus_pt ** int(g)
    else:
        mod = one_minus_pt ** g

    # weights[targets] with targets in {0, 1}; alpha is pre-folded into w_ref.
    if uniform_weight:
        focal = (mod * bce) * w_ref[0]
    else:
        w0 = w_ref[0]
        dw = w_ref[1] - w0
        focal = (w0 + dw * t) * (mod * bce)

    def accumulate(v):
        # VPU-only partial reduction; no cross-lane/cross-sublane XLU per step.
        acc_ref[...] += _sum_rows_to_8(v, tm)

    block_id = c * blocks_per_core + j
    last_block = total_blocks - 1
    needs_mask = rem_last != tm * LANES     # static Python bool

    if (not needs_mask) and (not has_dup):
        accumulate(focal)
    elif not needs_mask:
        # Only duplicate (clamped) trailing blocks must be skipped.
        @pl.when(block_id <= last_block)
        def _():
            accumulate(focal)
    else:
        @pl.when(block_id < last_block)
        def _():
            accumulate(focal)

        @pl.when(block_id == last_block)
        def _():
            # Mask only in the final block, using in-block indices (no overflow).
            row = lax.broadcasted_iota(jnp.int32, (tm, LANES), 0)
            lane = lax.broadcasted_iota(jnp.int32, (tm, LANES), 1)
            inblk = row * LANES + lane
            accumulate(jnp.where(inblk < rem_last, focal, 0.0))

    @pl.when(j == blocks_per_core - 1)
    def _():
        # Single XLU reduce + scalar SMEM store per shard.
        out_ref[0, 0] = jnp.sum(acc_ref[...])


def weighted_focal_loss(inputs, targets, weights=None, *, alpha=1.0, gamma=2,
                        tm=2048):
    """Pallas implementation of WeightedFocalLoss.forward (mean reduction)."""
    if targets.dtype == jnp.bool_:
        targets = targets.astype(jnp.int8)

    total = int(np.prod(inputs.shape))
    rows = -(-total // LANES)

    tm = max(ROW_ALIGN, _round_up(int(tm), ROW_ALIGN))
    sub = _sublane_multiple(inputs.dtype, targets.dtype)

    if rows <= tm:
        # Tiny input: one full-array block (always layout-legal); pad to one
        # clean packed tile — the copy is negligible at this size.
        rows_arr = _round_up(rows, sub)
        tm_eff = rows_arr
    else:
        # Large input: NO row padding — the last block is partial and masked
        # in-kernel, so the only (rare) pad is the lane pad for the reshape.
        rows_arr = rows
        tm_eff = tm

    padded = rows_arr * LANES
    x_flat = inputs.reshape(-1)            # native dtype, no f32 upcast copy
    t_flat = targets.reshape(-1)           # native narrow dtype
    if padded != total:
        pad = padded - total
        x_flat = jnp.pad(x_flat, (0, pad))
        t_flat = jnp.pad(t_flat, (0, pad))
    x2 = x_flat.reshape(rows_arr, LANES)
    t2 = t_flat.reshape(rows_arr, LANES)

    total_blocks = -(-rows_arr // tm_eff)
    num_partials = max(1, min(_num_tensorcores(), total_blocks))
    blocks_per_core = -(-total_blocks // num_partials)
    has_dup = num_partials * blocks_per_core > total_blocks
    last_block = total_blocks - 1
    rem_last = total - last_block * tm_eff * LANES   # valid elems in last block

    # Fold alpha into the 2-element class-weight vector (scalar-side work).
    if weights is None:
        w = jnp.full((2,), float(alpha), jnp.float32)
        uniform = True
    else:
        w = jnp.asarray(weights, jnp.float32) * jnp.float32(alpha)
        uniform = False

    kernel = functools.partial(
        _focal_loss_kernel,
        gamma=gamma, tm=tm_eff,
        blocks_per_core=blocks_per_core, total_blocks=total_blocks,
        rem_last=rem_last, uniform_weight=uniform, has_dup=has_dup)

    if has_dup:
        def in_map(c, j):   # clamp duplicate trailing blocks onto the last block
            return (jnp.minimum(c * blocks_per_core + j, last_block), 0)
    else:
        def in_map(c, j):
            return (c * blocks_per_core + j, 0)

    itemsizes = (jnp.dtype(inputs.dtype).itemsize
                 + jnp.dtype(targets.dtype).itemsize)
    cost = pl.CostEstimate(flops=14 * total,
                           transcendentals=2 * total,
                           bytes_accessed=int(itemsizes * total + 8
                                              + 4 * num_partials))

    partials = pl.pallas_call(
        kernel,
        out_shape=jax.ShapeDtypeStruct((num_partials, 1), jnp.float32),
        grid_spec=pltpu.PrefetchScalarGridSpec(
            num_scalar_prefetch=0,
            grid=(num_partials, blocks_per_core),
            in_specs=[
                pl.BlockSpec(memory_space=pltpu.SMEM),        # class weights (2,)
                pl.BlockSpec((tm_eff, LANES), in_map),        # logits tile
                pl.BlockSpec((tm_eff, LANES), in_map),        # targets tile
            ],
            out_specs=pl.BlockSpec((1, 1), lambda c, j: (c, 0),
                                   memory_space=pltpu.SMEM),  # per-shard sum
            scratch_shapes=[pltpu.VMEM((8, LANES), jnp.float32)],
        ),
        compiler_params=pltpu.CompilerParams(
            dimension_semantics=("parallel", "arbitrary"),
        ),
        cost_estimate=cost,
    )(w, x2, t2)

    # Combine per-core partial sums and normalise once (multiply, not divide).
    return jnp.sum(partials) * (1.0 / total)


def _reference(inputs, targets, weights, alpha=1.0, gamma=2):
    x = inputs.astype(jnp.float32)
    t = targets.astype(jnp.float32)
    bce = jnp.maximum(x, 0.0) - x * t + jnp.log1p(jnp.exp(-jnp.abs(x)))
    pt = jnp.exp(-bce)
    if weights is not None:
        w = weights[targets.astype(jnp.int32)]
    else:
        w = 1.0
    focal = alpha * w * (1.0 - pt) ** gamma * bce
    return jnp.mean(focal)


if __name__ == "__main__":
    key = jax.random.PRNGKey(0)
    k1, k2, k3, k4 = jax.random.split(key, 4)

    # Small NCHW-shaped logits/targets, consistent with the module's (N, *) contract.
    x = jax.random.normal(k1, (2, 4, 16, 16), dtype=jnp.float32)            # logits
    # Targets streamed in a narrow dtype (int8, exact 0/1) -> less HBM traffic.
    t = jax.random.bernoulli(k2, 0.3, (2, 4, 16, 16)).astype(jnp.int8)       # labels
    class_weights = jnp.array([0.25, 0.75], dtype=jnp.float32)               # [neg, pos]

    # 1) class-weighted path
    loss = jax.block_until_ready(weighted_focal_loss(x, t, class_weights))
    ref = _reference(x, t, class_weights)
    assert jnp.allclose(loss, ref, rtol=2e-5, atol=1e-6), (loss, ref)

    # 2) no-weights (uniform) path
    loss_u = jax.block_until_ready(weighted_focal_loss(x, t, None, alpha=0.5))
    ref_u = _reference(x, t, None, alpha=0.5)
    assert jnp.allclose(loss_u, ref_u, rtol=2e-5, atol=1e-6), (loss_u, ref_u)

    # 3) odd (non-128-aligned) element count -> exercises the lane pad + mask
    x3 = jax.random.normal(k3, (2, 3, 7, 11), dtype=jnp.float32)
    t3 = jax.random.bernoulli(k4, 0.5, (2, 3, 7, 11)).astype(jnp.int8)
    loss3 = jax.block_until_ready(weighted_focal_loss(x3, t3, class_weights))
    ref3 = _reference(x3, t3, class_weights)
    assert jnp.allclose(loss3, ref3, rtol=2e-5, atol=1e-6), (loss3, ref3)

    print("KERNEL_OK")
</pallas_src>

<mosaic_0001>
module attributes {stable_mosaic.version = 11 : i64} {
  func.func @_focal_loss_kernel(%arg0: i32, %arg1: i32, %arg2: memref<2xf32, #tpu.memory_space<smem>>, %arg3: memref<32x128xf32, #tpu.memory_space<vmem>>, %arg4: memref<32x128xi8, #tpu.memory_space<vmem>>, %arg5: memref<1x1xf32, #tpu.memory_space<smem>>, %arg6: memref<8x128xf32, #tpu.memory_space<vmem>>) attributes {dimension_semantics = [#tpu.dimension_semantics<parallel>, #tpu.dimension_semantics<arbitrary>], iteration_bounds = array<i64: 1, 1>, scalar_prefetch = 0 : i64, scratch_operands = 1 : i64, tpu.core_type = #tpu.core_type<tc>, window_params = [{transform_indices = @transform_0, window_bounds = array<i64: 2>}, {transform_indices = @transform_1, window_bounds = array<i64: 32, 128>}, {transform_indices = @transform_2, window_bounds = array<i64: 32, 128>}, {transform_indices = @transform_3, window_bounds = array<i64: 1, 1>}]} {
    %c0_i32 = arith.constant 0 : i32
    %0 = arith.cmpi eq, %arg1, %c0_i32 : i32
    %1 = arith.extui %0 : i1 to i32
    %c0_i32_0 = arith.constant 0 : i32
    %2 = arith.cmpi ne, %1, %c0_i32_0 : i32
    scf.if %2 {
      %cst_18 = arith.constant 0.000000e+00 : f32
      %53 = vector.broadcast %cst_18 : f32 to vector<8x128xf32>
      %c0_19 = arith.constant 0 : index
      %c0_20 = arith.constant 0 : index
      %54 = vector.load %arg6[%c0_19, %c0_20] : memref<8x128xf32, #tpu.memory_space<vmem>>, vector<8x128xf32>
      tpu.vector_store %arg6[%c0_19, %c0_20], %53 {strides = array<i32>} : memref<8x128xf32, #tpu.memory_space<vmem>>, vector<8x128xf32>,
    } else {
    }
    %c0 = arith.constant 0 : index
    %c0_1 = arith.constant 0 : index
    %3 = vector.load %arg3[%c0, %c0_1] : memref<32x128xf32, #tpu.memory_space<vmem>>, vector<32x128xf32>
    %c0_2 = arith.constant 0 : index
    %c0_3 = arith.constant 0 : index
    %4 = vector.load %arg4[%c0_2, %c0_3] : memref<32x128xi8, #tpu.memory_space<vmem>>, vector<32x128xi8>
    %5 = arith.sitofp %4 : vector<32x128xi8> to vector<32x128xf32>
    %6 = math.absf %3 : vector<32x128xf32>
    %cst = arith.constant 0.000000e+00 : f32
    %7 = vector.broadcast %cst : f32 to vector<32x128xf32>
    %8 = arith.subf %7, %6 : vector<32x128xf32>
    %9 = math.exp %8 : vector<32x128xf32>
    %cst_4 = arith.constant 0.000000e+00 : f32
    %10 = vector.broadcast %cst_4 : f32 to vector<32x128xf32>
    %11 = arith.maximumf %3, %10 : vector<32x128xf32>
    %12 = arith.mulf %3, %5 : vector<32x128xf32>
    %13 = arith.subf %11, %12 : vector<32x128xf32>
    %14 = math.log1p %9 : vector<32x128xf32>
    %15 = arith.addf %13, %14 : vector<32x128xf32>
    %cst_5 = arith.constant 1.000000e+00 : f32
    %16 = vector.broadcast %cst_5 : f32 to vector<32x128xf32>
    %17 = arith.addf %16, %9 : vector<32x128xf32>
    %18 = tpu.reciprocal %17 {approx = true} : vector<32x128xf32> -> vector<32x128xf32>
    %19 = arith.mulf %17, %18 : vector<32x128xf32>
    %cst_6 = arith.constant 2.000000e+00 : f32
    %20 = vector.broadcast %cst_6 : f32 to vector<32x128xf32>
    %21 = arith.subf %20, %19 : vector<32x128xf32>
    %22 = arith.mulf %18, %21 : vector<32x128xf32>
    %cst_7 = arith.constant 5.000000e-01 : f32
    %23 = vector.broadcast %cst_7 : f32 to vector<32x128xf32>
    %24 = arith.cmpf ogt, %5, %23 : vector<32x128xf32>
    %cst_8 = arith.constant 0.000000e+00 : f32
    %25 = vector.broadcast %cst_8 : f32 to vector<32x128xf32>
    %26 = arith.cmpf oge, %3, %25 : vector<32x128xf32>
    %27 = arith.xori %24, %26 : vector<32x128xi1>
    %cst_9 = arith.constant dense<true> : vector<32x128xi1>
    %28 = arith.xori %27, %cst_9 : vector<32x128xi1>
    %cst_10 = arith.constant 1.000000e+00 : f32
    %29 = vector.broadcast %cst_10 : f32 to vector<32x128xf32>
    %30 = arith.select %28, %9, %29 : vector<32x128xi1>, vector<32x128xf32>
    %31 = arith.mulf %30, %22 : vector<32x128xf32>
    %32 = arith.mulf %31, %31 : vector<32x128xf32>
    %c0_11 = arith.constant 0 : index
    %33 = memref.load %arg2[%c0_11] : memref<2xf32, #tpu.memory_space<smem>>
    %c1 = arith.constant 1 : index
    %34 = memref.load %arg2[%c1] : memref<2xf32, #tpu.memory_space<smem>>
    %35 = arith.subf %34, %33 : f32
    %36 = vector.broadcast %35 : f32 to vector<32x128xf32>
    %37 = arith.mulf %36, %5 : vector<32x128xf32>
    %38 = vector.broadcast %33 : f32 to vector<32x128xf32>
    %39 = arith.addf %38, %37 : vector<32x128xf32>
    %40 = arith.mulf %32, %15 : vector<32x128xf32>
    %41 = arith.mulf %39, %40 : vector<32x128xf32>
    %c1_i32 = arith.constant 1 : i32
    %42 = arith.muli %arg0, %c1_i32 : i32
    %43 = arith.addi %42, %arg1 : i32
    %c0_i32_12 = arith.constant 0 : i32
    %44 = arith.cmpi slt, %43, %c0_i32_12 : i32
    %45 = arith.extui %44 : i1 to i32
    %c0_i32_13 = arith.constant 0 : i32
    %46 = arith.cmpi ne, %45, %c0_i32_13 : i32
    scf.if %46 {
      %c0_18 = arith.constant 0 : index
      %c0_19 = arith.constant 0 : index
      %53 = vector.load %arg6[%c0_18, %c0_19] : memref<8x128xf32, #tpu.memory_space<vmem>>, vector<8x128xf32>
      %54 = vector.extract_strided_slice %41 {offsets = [0, 0], sizes = [8, 128], strides = [1, 1]} : vector<32x128xf32> to vector<8x128xf32>
      %55 = vector.extract_strided_slice %41 {offsets = [8, 0], sizes = [8, 128], strides = [1, 1]} : vector<32x128xf32> to vector<8x128xf32>
      %56 = vector.extract_strided_slice %41 {offsets = [16, 0], sizes = [8, 128], strides = [1, 1]} : vector<32x128xf32> to vector<8x128xf32>
      %57 = vector.extract_strided_slice %41 {offsets = [24, 0], sizes = [8, 128], strides = [1, 1]} : vector<32x128xf32> to vector<8x128xf32>
      %58 = arith.addf %54, %55 : vector<8x128xf32>
      %59 = arith.addf %56, %57 : vector<8x128xf32>
      %60 = arith.addf %58, %59 : vector<8x128xf32>
      %61 = arith.addf %53, %60 : vector<8x128xf32>
      %c0_20 = arith.constant 0 : index
      %c0_21 = arith.constant 0 : index
      %62 = vector.load %arg6[%c0_20, %c0_21] : memref<8x128xf32, #tpu.memory_space<vmem>>, vector<8x128xf32>
      tpu.vector_store %arg6[%c0_20, %c0_21], %61 {strides = array<i32>} : memref<8x128xf32, #tpu.memory_space<vmem>>, vector<8x128xf32>,
    } else {
    }
    %c0_i32_14 = arith.constant 0 : i32
    %47 = arith.cmpi eq, %43, %c0_i32_14 : i32
    %48 = arith.extui %47 : i1 to i32
    %c0_i32_15 = arith.constant 0 : i32
    %49 = arith.cmpi ne, %48, %c0_i32_15 : i32
    scf.if %49 {
      %53 = tpu.iota {dimensions = array<i32: 0>} : vector<32x128xi32>
      %54 = tpu.iota {dimensions = array<i32: 1>} : vector<32x128xi32>
      %c128_i32 = arith.constant 128 : i32
      %55 = vector.broadcast %c128_i32 : i32 to vector<32x128xi32>
      %56 = arith.muli %53, %55 : vector<32x128xi32>
      %57 = arith.addi %56, %54 : vector<32x128xi32>
      %c2048_i32 = arith.constant 2048 : i32
      %58 = vector.broadcast %c2048_i32 : i32 to vector<32x128xi32>
      %59 = arith.cmpi slt, %57, %58 : vector<32x128xi32>
      %cst_18 = arith.constant 0.000000e+00 : f32
      %60 = vector.broadcast %cst_18 : f32 to vector<32x128xf32>
      %61 = arith.select %59, %41, %60 : vector<32x128xi1>, vector<32x128xf32>
      %c0_19 = arith.constant 0 : index
      %c0_20 = arith.constant 0 : index
      %62 = vector.load %arg6[%c0_19, %c0_20] : memref<8x128xf32, #tpu.memory_space<vmem>>, vector<8x128xf32>
      %63 = vector.extract_strided_slice %61 {offsets = [0, 0], sizes = [8, 128], strides = [1, 1]} : vector<32x128xf32> to vector<8x128xf32>
      %64 = vector.extract_strided_slice %61 {offsets = [8, 0], sizes = [8, 128], strides = [1, 1]} : vector<32x128xf32> to vector<8x128xf32>
      %65 = vector.extract_strided_slice %61 {offsets = [16, 0], sizes = [8, 128], strides = [1, 1]} : vector<32x128xf32> to vector<8x128xf32>
      %66 = vector.extract_strided_slice %61 {offsets = [24, 0], sizes = [8, 128], strides = [1, 1]} : vector<32x128xf32> to vector<8x128xf32>
      %67 = arith.addf %63, %64 : vector<8x128xf32>
      %68 = arith.addf %65, %66 : vector<8x128xf32>
      %69 = arith.addf %67, %68 : vector<8x128xf32>
      %70 = arith.addf %62, %69 : vector<8x128xf32>
      %c0_21 = arith.constant 0 : index
      %c0_22 = arith.constant 0 : index
      %71 = vector.load %arg6[%c0_21, %c0_22] : memref<8x128xf32, #tpu.memory_space<vmem>>, vector<8x128xf32>
      tpu.vector_store %arg6[%c0_21, %c0_22], %70 {strides = array<i32>} : memref<8x128xf32, #tpu.memory_space<vmem>>, vector<8x128xf32>,
    } else {
    }
    %c0_i32_16 = arith.constant 0 : i32
    %50 = arith.cmpi eq, %arg1, %c0_i32_16 : i32
    %51 = arith.extui %50 : i1 to i32
    %c0_i32_17 = arith.constant 0 : i32
    %52 = arith.cmpi ne, %51, %c0_i32_17 : i32
    scf.if %52 {
      %c0_18 = arith.constant 0 : index
      %c0_19 = arith.constant 0 : index
      %53 = vector.load %arg6[%c0_18, %c0_19] : memref<8x128xf32, #tpu.memory_space<vmem>>, vector<8x128xf32>
      %54 = vector.shape_cast %53 : vector<8x128xf32> to vector<1x8x128xf32>
      %cst_20 = arith.constant dense<0.000000e+00> : vector<1xf32>
      %55 = vector.multi_reduction <add>, %54, %cst_20 [1, 2] : vector<1x8x128xf32> to vector<1xf32>
      %56 = vector.shape_cast %55 : vector<1xf32> to vector<1x1x1xf32>
      %57 = vector.extract %56[0, 0, 0] : f32 from vector<1x1x1xf32>
      %c0_21 = arith.constant 0 : index
      %c0_22 = arith.constant 0 : index
      %58 = memref.load %arg5[%c0_21, %c0_22] : memref<1x1xf32, #tpu.memory_space<smem>>
      memref.store %57, %arg5[%c0_21, %c0_22] : memref<1x1xf32, #tpu.memory_space<smem>>
    } else {
    }
    return
  }
  func.func @transform_0(%arg0: i32, %arg1: i32) -> i32 {
    %c0_i32 = arith.constant 0 : i32
    %c0_i32_0 = arith.constant 0 : i32
    return %c0_i32 : i32
  }
  func.func @transform_1(%arg0: i32, %arg1: i32) -> (i32, i32) {
    %c1_i32 = arith.constant 1 : i32
    %0 = arith.muli %arg0, %c1_i32 : i32
    %1 = arith.addi %0, %arg1 : i32
    %c0_i32 = arith.constant 0 : i32
    %c0_i32_0 = arith.constant 0 : i32
    return %1, %c0_i32 : i32, i32
  }
  func.func @transform_2(%arg0: i32, %arg1: i32) -> (i32, i32) {
    %c1_i32 = arith.constant 1 : i32
    %0 = arith.muli %arg0, %c1_i32 : i32
    %1 = arith.addi %0, %arg1 : i32
    %c0_i32 = arith.constant 0 : i32
    %c0_i32_0 = arith.constant 0 : i32
    return %1, %c0_i32 : i32, i32
  }
  func.func @transform_3(%arg0: i32, %arg1: i32) -> (i32, i32) {
    %c0_i32 = arith.constant 0 : i32
    %c0_i32_0 = arith.constant 0 : i32
    return %arg0, %c0_i32 : i32, i32
  }
}

</mosaic_0001>

<llo_original>
// kernel: tpu_custom_call.1
$region0: #{tpu_custom_call.1}
  #allocation0 [shape = 'u32[]', space=smem, size = 0x4, offset = 0x4, fixed_abs, tag = 'smem constant byte address 0x4 - core index']
  #allocation1 [shape = 'u32[144,128]{1,0:T(1,128)}', space=vmem, size = 0x12000, scoped, tag = 'internal scratch']
  #allocation2 [shape = 'f32[8,128]{1,0:T(8,128)}', space=vmem, size = 0x1000, scoped, tag = 'scratch operand']
  %s0 = inlined_call_operand.hbm [shape: f32[2], index: 0, kind: input, shape index: {}]
  %s1 = inlined_call_operand.hbm [shape: f32[32,128], index: 1, kind: input, shape index: {}]
  %s2 = inlined_call_operand.hbm [shape: s8[32,128], index: 2, kind: input, shape index: {}]
  %s3 = inlined_call_operand.hbm [shape: f32[1,1], index: 3, kind: output, shape index: {}]
  %s4 = sld [smem:[#allocation0]]
  $region50: #{tpu_custom_call.1} parent=0
    _
  %s6 = ssub.s32 1, %s4
  %s7 = scalar_select 0, %s6, %s4
  $region1: #{tpu_custom_call.1} parent=0
    #allocation3 [shape = 'u8[512]{0}', space=smem, size = 0x200, scoped, tag = 'input window, operand 0, single buffered']
    #allocation4 [shape = 's32[1]{0}', space=sflag, size = 0x4, scoped, tag = 'scoped memory for tpu_custom_call.1']
    #allocation5 [shape = 's32[1]{0}', space=sflag, size = 0x4, scoped, tag = 'scoped memory for tpu_custom_call.1']
    #allocation6 [shape = 's32[1]{0}', space=sflag, size = 0x4, scoped, tag = 'scoped memory for tpu_custom_call.1']
    #allocation7 [shape = 'u8[16384]{0}', space=vmem, size = 0x4000, scoped, tag = 'input window, operand 1, single buffered']
    #allocation8 [shape = 'u8[4096]{0}', space=vmem, size = 0x1000, scoped, tag = 'input window, operand 2, single buffered']
    #allocation9 [shape = 's32[1]{0}', space=sflag, size = 0x4, scoped, tag = 'scoped memory for tpu_custom_call.1']
    #allocation10 [shape = 'u8[512]{0}', space=smem, size = 0x200, scoped, tag = 'output window, operand 0, single buffered']
    %8 = vsyncpa [#allocation5], 0
    %9 = vsyncpa [#allocation4], 0
    %10 = vsyncpa [#allocation9], 0
    %11 = vsyncpa [#allocation6], 0
    // Predicated region
    $region2: #{tpu_custom_call.1} parent=1 // pred_check
      _
    $region3: #{tpu_custom_call.1} parent=1 // pred_check_branch
      %13 = sbr.rel (0) target = $region5
    $region4: #{tpu_custom_call.1} parent=1 // pred_region
      %s15 = ssub.s32 16, 16
      %16 = vsyncadd [#allocation5], %s15
      %19 = dma.hbm_to_smem %s0, 16, [#allocation3], [#allocation5]
    $region5: #{tpu_custom_call.1} parent=1 // pred_fallthru
      _
    // Predicated region
    $region6: #{tpu_custom_call.1} parent=1 // pred_check
      _
    $region7: #{tpu_custom_call.1} parent=1 // pred_check_branch
      %21 = sbr.rel (0) target = $region9
    $region8: #{tpu_custom_call.1} parent=1 // pred_region
      %s22 = sadd.s32 0, 0
      %s23 = smul.u32 4, %s22
      %s25 = ssub.s32 512, 512
      %26 = vsyncadd [#allocation4], %s25
      %s27 = smul.addr %s23, 128
      %s28 = scalar_lea.hbm %s1, %s27
      %s29 = sshll.u32 [#allocation7], 4
      %s30 = int_to_ptr.vmem [resolvable:$true] %s29
      %35 = dma.hbm_to_vmem [thread:$0]  %s28, 512, %s30, [#allocation4], 128, 128, 8
    $region9: #{tpu_custom_call.1} parent=1 // pred_fallthru
      _
    // Predicated region
    $region10: #{tpu_custom_call.1} parent=1 // pred_check
      _
    $region11: #{tpu_custom_call.1} parent=1 // pred_check_branch
      %37 = sbr.rel (0) target = $region13
    $region12: #{tpu_custom_call.1} parent=1 // pred_region
      %s38 = sadd.s32 0, 0
      %s40 = ssub.s32 128, 128
      %41 = vsyncadd [#allocation9], %s40
      %s42 = smul.addr %s38, 128
      %s43 = scalar_lea.hbm %s2, %s42
      %s45 = sshll.u32 [#allocation8], 4
      %s46 = int_to_ptr.vmem [resolvable:$true] %s45
      %48 = dma.hbm_to_vmem [thread:$0]  %s43, 128, %s46, [#allocation9]
    $region13: #{tpu_custom_call.1} parent=1 // pred_fallthru
      _
    // Predicated region
    $region14: #{tpu_custom_call.1} parent=1 // pred_check
      _
    $region15: #{tpu_custom_call.1} parent=1 // pred_check_branch
      %50 = sbr.rel (0) target = $region17
    $region16: #{tpu_custom_call.1} parent=1 // pred_region
      %51 = dma.done [#allocation5], 16
    $region17: #{tpu_custom_call.1} parent=1 // pred_fallthru
      _
    // Predicated region
    $region18: #{tpu_custom_call.1} parent=1 // pred_check
      _
    $region19: #{tpu_custom_call.1} parent=1 // pred_check_branch
      %53 = sbr.rel (0) target = $region21
    $region20: #{tpu_custom_call.1} parent=1 // pred_region
      %54 = dma.done [#allocation4], 512
    $region21: #{tpu_custom_call.1} parent=1 // pred_fallthru
      _
    // Predicated region
    $region22: #{tpu_custom_call.1} parent=1 // pred_check
      _
    $region23: #{tpu_custom_call.1} parent=1 // pred_check_branch
      %56 = sbr.rel (0) target = $region25
    $region24: #{tpu_custom_call.1} parent=1 // pred_region
      %57 = dma.done [#allocation9], 128
    $region25: #{tpu_custom_call.1} parent=1 // pred_fallthru
      _
    %58 = sfence
    %s59 = sadd.s32 0, 0
    %s60 = smul.u32 4, %s59
    %s61 = sadd.s32 0, 0
    %p62 = scmp.eq.s32.totalorder 0, 0
    // Predicated region
    $region26: #{tpu_custom_call.1} parent=1 // pred_check
      %p63 = pneg %p62
    $region27: #{tpu_custom_call.1} parent=1 // pred_check_branch
      %65 = sbr.rel (%p63) target = $region29
    $region28: #{tpu_custom_call.1} parent=1 // pred_region
      %66 = vst [vmem:[#allocation2] sm:$0xff] 0.0
    $region29: #{tpu_custom_call.1} parent=1 // pred_fallthru
      _
    %v67 = vld [vmem:[#allocation7] sm:$0xff]
    %v68 = vld [vmem:[#allocation7 + $0x8] sm:$0xff]
    %v69 = vld [vmem:[#allocation7 + $0x10] sm:$0xff]
    %v70 = vld [vmem:[#allocation7 + $0x18] sm:$0xff]
    %v71 = vld [vmem:[#allocation8] sm:$0xff]
    %v72 = vunpack.c.0.s8 %v71
    %v73 = vunpack.c.1.s8 %v71
    %v74 = vunpack.c.2.s8 %v71
    %v75 = vunpack.c.3.s8 %v71
    %v76 = vcvt.s32.f32 %v72
    %v77 = vcvt.s32.f32 %v73
    %v78 = vcvt.s32.f32 %v74
    %v79 = vcvt.s32.f32 %v75
    %v80 = vand.u32 2147483647, %v67
    %v81 = vand.u32 2147483647, %v68
    %v82 = vand.u32 2147483647, %v69
    %v83 = vand.u32 2147483647, %v70
    %v84 = vsub.f32 0.0, %v80
    %v85 = vsub.f32 0.0, %v81
    %v86 = vsub.f32 0.0, %v82
    %v87 = vsub.f32 0.0, %v83
    %v88 = vmul.f32 %v84, 1.442695
    %v89 = vpow.pop %v88
    %v90 = vmul.f32 %v85, 1.442695
    %v91 = vpow.pop %v90
    %v92 = vmul.f32 %v86, 1.442695
    %v93 = vpow.pop %v92
    %v94 = vmul.f32 %v87, 1.442695
    %v95 = vpow.pop %v94
    %v96 = vmax.f32 %v67, 0.0
    %v97 = vmax.f32 %v68, 0.0
    %v98 = vmax.f32 %v69, 0.0
    %v99 = vmax.f32 %v70, 0.0
    %v100 = vmul.f32 %v67, %v76
    %v101 = vmul.f32 %v68, %v77
    %v102 = vmul.f32 %v69, %v78
    %v103 = vmul.f32 %v70, %v79
    %v104 = vsub.f32 %v96, %v100
    %v105 = vsub.f32 %v97, %v101
    %v106 = vsub.f32 %v98, %v102
    %v107 = vsub.f32 %v99, %v103
    %v108 = vadd.f32 %v89, 1.0
    %v109 = vlog2.pop %v108
    %v110 = vmul.f32 %v109, 0.6931472
    %v111 = vmul.f32 -0.5, %v89
    %v112 = vadd.f32 %v111, 1.0
    %v113 = vmul.f32 %v112, %v89
    %v114 = vand.u32 2147483647, %v89
    %vm115 = vcmp.lt.f32.partialorder %v114, 0.0004427343
    %v116 = vsel %vm115, %v113, %v110
    %v117 = vadd.f32 %v91, 1.0
    %v118 = vlog2.pop %v117
    %v119 = vmul.f32 %v118, 0.6931472
    %v120 = vmul.f32 -0.5, %v91
    %v121 = vadd.f32 %v120, 1.0
    %v122 = vmul.f32 %v121, %v91
    %v123 = vand.u32 2147483647, %v91
    %vm124 = vcmp.lt.f32.partialorder %v123, 0.0004427343
    %v125 = vsel %vm124, %v122, %v119
    %v126 = vadd.f32 %v93, 1.0
    %v127 = vlog2.pop %v126
    %v128 = vmul.f32 %v127, 0.6931472
    %v129 = vmul.f32 -0.5, %v93
    %v130 = vadd.f32 %v129, 1.0
    %v131 = vmul.f32 %v130, %v93
    %v132 = vand.u32 2147483647, %v93
    %vm133 = vcmp.lt.f32.partialorder %v132, 0.0004427343
    %v134 = vsel %vm133, %v131, %v128
    %v135 = vadd.f32 %v95, 1.0
    %v136 = vlog2.pop %v135
    %v137 = vmul.f32 %v136, 0.6931472
    %v138 = vmul.f32 -0.5, %v95
    %v139 = vadd.f32 %v138, 1.0
    %v140 = vmul.f32 %v139, %v95
    %v141 = vand.u32 2147483647, %v95
    %vm142 = vcmp.lt.f32.partialorder %v141, 0.0004427343
    %v143 = vsel %vm142, %v140, %v137
    %v144 = vadd.f32 %v104, %v116
    %v145 = vadd.f32 %v105, %v125
    %v146 = vadd.f32 %v106, %v134
    %v147 = vadd.f32 %v107, %v143
    %v148 = vadd.f32 %v89, 1.0
    %v149 = vadd.f32 %v91, 1.0
    %v150 = vadd.f32 %v93, 1.0
    %v151 = vadd.f32 %v95, 1.0
    %v152 = vrcp.pop %v148
    %v153 = vrcp.pop %v149
    %v154 = vrcp.pop %v150
    %v155 = vrcp.pop %v151
    %v156 = vmul.f32 %v148, %v152
    %v157 = vmul.f32 %v149, %v153
    %v158 = vmul.f32 %v150, %v154
    %v159 = vmul.f32 %v151, %v155
    %v160 = vsub.f32 2.0, %v156
    %v161 = vsub.f32 2.0, %v157
    %v162 = vsub.f32 2.0, %v158
    %v163 = vsub.f32 2.0, %v159
    %v164 = vmul.f32 %v152, %v160
    %v165 = vmul.f32 %v153, %v161
    %v166 = vmul.f32 %v154, %v162
    %v167 = vmul.f32 %v155, %v163
    %vm168 = vcmp.gt.f32.partialorder %v76, 0.5
    %vm169 = vcmp.gt.f32.partialorder %v77, 0.5
    %vm170 = vcmp.gt.f32.partialorder %v78, 0.5
    %vm171 = vcmp.gt.f32.partialorder %v79, 0.5
    %vm172 = vcmp.ge.f32.partialorder %v67, 0.0
    %vm173 = vcmp.ge.f32.partialorder %v68, 0.0
    %vm174 = vcmp.ge.f32.partialorder %v69, 0.0
    %vm175 = vcmp.ge.f32.partialorder %v70, 0.0
    %vm176 = vmxor %vm168, %vm172
    %vm177 = vmxor %vm169, %vm173
    %vm178 = vmxor %vm170, %vm174
    %vm179 = vmxor %vm171, %vm175
    %vm180 = vmxor %vm176, 1
    %vm181 = vmxor %vm177, 1
    %vm182 = vmxor %vm178, 1
    %vm183 = vmxor %vm179, 1
    %v184 = vsel %vm180, %v89, 1.0
    %v185 = vsel %vm181, %v91, 1.0
    %v186 = vsel %vm182, %v93, 1.0
    %v187 = vsel %vm183, %v95, 1.0
    %v188 = vmul.f32 %v184, %v164
    %v189 = vmul.f32 %v185, %v165
    %v190 = vmul.f32 %v186, %v166
    %v191 = vmul.f32 %v187, %v167
    %v192 = vmul.f32 %v188, %v188
    %v193 = vmul.f32 %v189, %v189
    %v194 = vmul.f32 %v190, %v190
    %v195 = vmul.f32 %v191, %v191
    %s196 = sld [smem:[#allocation3]]
    %s197 = sld [smem:[#allocation3 + $0x1]]
    %s198 = ssub.f32 %s197, %s196
    %v199 = vstv %s198
    %v200 = vmul.f32 %v199, %v76
    %v201 = vmul.f32 %v199, %v77
    %v202 = vmul.f32 %v199, %v78
    %v203 = vmul.f32 %v199, %v79
    %v204 = vstv %s196
    %v205 = vadd.f32 %v204, %v200
    %v206 = vadd.f32 %v204, %v201
    %v207 = vadd.f32 %v204, %v202
    %v208 = vadd.f32 %v204, %v203
    %v209 = vmul.f32 %v192, %v144
    %v210 = vmul.f32 %v193, %v145
    %v211 = vmul.f32 %v194, %v146
    %v212 = vmul.f32 %v195, %v147
    %v213 = vmul.f32 %v205, %v209
    %v214 = vmul.f32 %v206, %v210
    %v215 = vmul.f32 %v207, %v211
    %v216 = vmul.f32 %v208, %v212
    %s217 = sadd.s32 0, 0
    %p218 = scmp.lt.s32.totalorder %s217, 0
    // Predicated region
    $region30: #{tpu_custom_call.1} parent=1 // pred_check
      %p219 = pneg %p218
    $region31: #{tpu_custom_call.1} parent=1 // pred_check_branch
      %221 = sbr.rel (%p219) target = $region33
    $region32: #{tpu_custom_call.1} parent=1 // pred_region
      %v222 = vld [vmem:[#allocation2] sm:$0xff]
      %v223 = vadd.f32 %v213, %v214
      %v224 = vadd.f32 %v215, %v216
      %v225 = vadd.f32 %v223, %v224
      %v226 = vadd.f32 %v222, %v225
      %227 = vst [vmem:[#allocation2] sm:$0xff] %v226
    $region33: #{tpu_custom_call.1} parent=1 // pred_fallthru
      _
    %p228 = scmp.eq.s32.totalorder %s217, 0
    // Predicated region
    $region34: #{tpu_custom_call.1} parent=1 // pred_check
      %p229 = pneg %p228
    $region35: #{tpu_custom_call.1} parent=1 // pred_check_branch
      %231 = sbr.rel (%p229) target = $region37
    $region36: #{tpu_custom_call.1} parent=1 // pred_region
      %v232 = vlaneseq
      %v233 = vshrl.u32 %v232, 7
      %v234 = vadd.s32 %v233, 8
      %v235 = vadd.s32 %v233, 16
      %v236 = vadd.s32 %v233, 24
      %v237 = vlaneseq
      %v238 = vand.u32 %v237, 127
      %v239 = vmul.u32 %v233, 128
      %v240 = vmul.u32 %v234, 128
      %v241 = vmul.u32 %v235, 128
      %v242 = vmul.u32 %v236, 128
      %v243 = vadd.s32 %v239, %v238
      %v244 = vadd.s32 %v240, %v238
      %v245 = vadd.s32 %v241, %v238
      %v246 = vadd.s32 %v242, %v238
      %vm247 = vcmp.lt.s32.totalorder %v243, 2048
      %vm248 = vcmp.lt.s32.totalorder %v244, 2048
      %vm249 = vcmp.lt.s32.totalorder %v245, 2048
      %vm250 = vcmp.lt.s32.totalorder %v246, 2048
      %v251 = vsel %vm247, %v213, 0.0
      %v252 = vsel %vm248, %v214, 0.0
      %v253 = vsel %vm249, %v215, 0.0
      %v254 = vsel %vm250, %v216, 0.0
      %v255 = vld [vmem:[#allocation2] sm:$0xff]
      %v256 = vadd.f32 %v251, %v252
      %v257 = vadd.f32 %v253, %v254
      %v258 = vadd.f32 %v256, %v257
      %v259 = vadd.f32 %v255, %v258
      %260 = vst [vmem:[#allocation2] sm:$0xff] %v259
    $region37: #{tpu_custom_call.1} parent=1 // pred_fallthru
      _
    // Predicated region
    $region38: #{tpu_custom_call.1} parent=1 // pred_check
      %p261 = pneg %p62
    $region39: #{tpu_custom_call.1} parent=1 // pred_check_branch
      %263 = sbr.rel (%p261) target = $region41
    $region40: #{tpu_custom_call.1} parent=1 // pred_region
      %v264 = vld [vmem:[#allocation2] sm:$0xff]
      %265 = vadd.xlane.f32.xlu0 %v264
      %v266 = vpop.xlane.xlu0 %265
      %v267 = vrot.slane %v266, 4
      %v268 = vadd.f32 %v266, %v267
      %v269 = vrot.slane %v268, 2
      %v270 = vadd.f32 %v268, %v269
      %v271 = vrot.slane %v270, 1
      %v272 = vadd.f32 %v270, %v271
      %s273 = vtos %v272
      %s274 = scalar_lea.smem [#allocation10], 0
      %275 = sst [smem:[%s274]] %s273
    $region41: #{tpu_custom_call.1} parent=1 // pred_fallthru
      _
    // Predicated region
    $region42: #{tpu_custom_call.1} parent=1 // pred_check
      _
    $region43: #{tpu_custom_call.1} parent=1 // pred_check_branch
      %277 = sbr.rel (0) target = $region45
    $region44: #{tpu_custom_call.1} parent=1 // pred_region
      %s279 = ssub.s32 16, 16
      %280 = vsyncadd [#allocation6], %s279
      %283 = dma.smem_to_hbm [#allocation10], 16, %s3, [#allocation6]
    $region45: #{tpu_custom_call.1} parent=1 // pred_fallthru
      _
    // Predicated region
    $region46: #{tpu_custom_call.1} parent=1 // pred_check
      _
    $region47: #{tpu_custom_call.1} parent=1 // pred_check_branch
      %285 = sbr.rel (0) target = $region49
    $region48: #{tpu_custom_call.1} parent=1 // pred_region
      %286 = dma.done [#allocation6], 16
    $region49: #{tpu_custom_call.1} parent=1 // pred_fallthru
      _
    %287 = sfence
    %288 = vsyncpa [#allocation4], 1
    %289 = vsyncpa [#allocation9], 1
    %290 = vsyncpa [#allocation5], 1
    %291 = vsyncpa [#allocation6], 1

</llo_original>
